<compile_context>
chip_gen: v5e
topology: v5e:2x2
jax: 0.10.0
libtpu: 0.0.40
codegen_flags: <defaults>
</compile_context>

<pallas_src>
import functools

import jax
import jax.numpy as jnp
from jax.experimental import pallas as pl
from jax.experimental.pallas import tpu as pltpu


# ---------------------------------------------------------------------------
# Pallas kernel: fused space-to-depth conv (4 taps) + BatchNorm + LeakyReLU
# ---------------------------------------------------------------------------
def _down_block_kernel(xs_ref, w_ref, scale_ref, shift_ref, o_ref, *, wp1):
    # xs_ref:    ((HB+2)*wp1, CK) bf16  flattened space-to-depth slab (1 image)
    # w_ref:     (4, CK, C_pad)   bf16  per-tap conv weights (VMEM-resident)
    # scale_ref: (1, C_pad)       f32   gamma / sqrt(var + eps)
    # shift_ref: (1, C_pad)       f32   beta - mean * scale
    # o_ref:     (HB*wp1, C_pad)  bf16  output rows; column wp1-1 of each output
    #                                   row is a throwaway padding column.
    L = o_ref.shape[0]
    acc = None
    for t, (dy, dx) in enumerate(((0, 0), (0, 1), (1, 0), (1, 1))):
        s = dy * wp1 + dx                    # static shift into the flat rows
        part = jnp.dot(xs_ref[s:s + L, :], w_ref[t],
                       preferred_element_type=jnp.float32)
        acc = part if acc is None else acc + part
    y = acc * scale_ref[...] + shift_ref[...]     # eval-mode BatchNorm, f32
    y = jnp.where(y > 0, y, 0.2 * y)              # LeakyReLU(0.2), f32
    o_ref[...] = y.astype(o_ref.dtype)            # bf16 store (lane-dense)


# ---------------------------------------------------------------------------
# VMEM budgeting helpers (generation-aware)
# ---------------------------------------------------------------------------
def _vmem_budget_bytes():
    try:
        cap = int(pltpu.get_tpu_info().vmem_capacity_bytes)
    except Exception:
        cap = 64 * 2**20                     # safe for v5e / v6e / v7x
    return max(cap - 16 * 2**20, 24 * 2**20)


def _pick_row_chunk(ho, wp1, ck, c_pad, budget):
    """Output rows per kernel step such that the per-step slab fits VMEM."""
    fixed = 2 * 4 * ck * c_pad * 2 + 4 * c_pad * 4 + (4 << 20)
    per_row = wp1 * (2 * ck * 2              # input rows (double-buffered)
                     + 2 * c_pad * 2         # output rows (double-buffered)
                     + 3 * c_pad * 4         # f32 acc / epilogue temps
                     + 2 * ck * 2)           # tap-slab relayout temps
    avail = budget - fixed
    if avail <= per_row:
        return 1
    return int(max(1, min(ho, avail // per_row)))


def _run_fused(xs_flat, w_taps, scale, shift, hb, wp1):
    """xs_flat: (N, (hb+2)*wp1, CK) bf16 -> (N, hb*wp1, C_pad) bf16."""
    N, rows, ck = xs_flat.shape
    c_pad = w_taps.shape[-1]
    L = hb * wp1

    est = (2 * rows * ck * 2 + 2 * 4 * ck * c_pad * 2 + 4 * c_pad * 4
           + 2 * L * c_pad * 2 + 3 * L * c_pad * 4 + 2 * L * ck * 2)
    vmem_limit = int(min(_vmem_budget_bytes(),
                         max(int(1.3 * est), 32 * 2**20)))

    flops = 2 * N * L * ck * c_pad * 4
    bytes_accessed = (N * rows * ck * 2 + N * L * c_pad * 2
                      + 4 * ck * c_pad * 2 + 2 * 4 * c_pad)

    kernel = functools.partial(_down_block_kernel, wp1=wp1)
    return pl.pallas_call(
        kernel,
        out_shape=jax.ShapeDtypeStruct((N, L, c_pad), jnp.bfloat16),
        grid=(N,),
        in_specs=[
            pl.BlockSpec((None, rows, ck), lambda n: (n, 0, 0)),
            pl.BlockSpec((4, ck, c_pad), lambda n: (0, 0, 0)),   # resident
            pl.BlockSpec((1, c_pad), lambda n: (0, 0)),          # resident
            pl.BlockSpec((1, c_pad), lambda n: (0, 0)),          # resident
        ],
        out_specs=pl.BlockSpec((None, L, c_pad), lambda n: (n, 0, 0)),
        compiler_params=pltpu.CompilerParams(
            dimension_semantics=("parallel",),
            vmem_limit_bytes=vmem_limit),
        cost_estimate=pl.CostEstimate(flops=flops, transcendentals=0,
                                      bytes_accessed=bytes_accessed),
    )(xs_flat, w_taps, scale, shift)


# ---------------------------------------------------------------------------
# DownBlock forward (NHWC core + NCHW wrapper matching the PyTorch module)
# ---------------------------------------------------------------------------
def down_block_forward_nhwc(x_nhwc, params, *, pad_output_channels=False):
    """x_nhwc: (N, H, W, C>=C_in).  Returns NHWC bf16 (optionally 128-padded C)."""
    w = params["conv_w"]                       # (C_out, C_in, 4, 4)
    gamma, beta = params["bn_gamma"], params["bn_beta"]
    mean, var, eps = params["bn_mean"], params["bn_var"], params["bn_eps"]

    N, H, W, Cx = x_nhwc.shape
    C_out, C_in = w.shape[0], w.shape[1]
    assert H % 2 == 0 and W % 2 == 0, "DownBlock expects even spatial dims"
    if Cx > C_in:     # consume channel-padded activations from a previous block
        w = jnp.pad(w, ((0, 0), (0, Cx - C_in), (0, 0), (0, 0)))
    C = w.shape[1]
    Ho, Wo = H // 2, W // 2
    wp1, ck = Wo + 1, 4 * C
    c_pad = ((C_out + 127) // 128) * 128       # lane-dense output channels

    # ---- host prep: pad + space-to-depth + flatten (zero blowup, one pass) ----
    xb = x_nhwc.astype(jnp.bfloat16)
    xp = jnp.pad(xb, ((0, 0), (1, 3), (1, 1), (0, 0)))   # extra 2 zero rows = slack
    xs = xp.reshape(N, Ho + 2, 2, wp1, 2, C)
    xs = jnp.transpose(xs, (0, 1, 3, 2, 4, 5)).reshape(N, Ho + 2, wp1, ck)

    # ---- per-tap weights: (dy,dx) x (py,px,c) x C_out, bf16, channel-padded ----
    w_t = jnp.transpose(w, (2, 3, 1, 0)).reshape(2, 2, 2, 2, C, C_out)
    w_taps = jnp.transpose(w_t, (0, 2, 1, 3, 4, 5)).reshape(4, ck, C_out)
    w_taps = jnp.pad(w_taps, ((0, 0), (0, 0), (0, c_pad - C_out))).astype(jnp.bfloat16)

    scale = (gamma / jnp.sqrt(var + eps)).astype(jnp.float32)
    shift = (beta - mean * scale).astype(jnp.float32)
    scale_p = jnp.pad(scale, (0, c_pad - C_out)).reshape(1, c_pad)
    shift_p = jnp.pad(shift, (0, c_pad - C_out)).reshape(1, c_pad)

    # ---- row chunking only when a full image would not fit the VMEM budget ----
    hb = _pick_row_chunk(Ho, wp1, ck, c_pad, _vmem_budget_bytes())
    outs = []
    for r0 in range(0, Ho, hb):
        hc = min(hb, Ho - r0)
        xs_c = xs[:, r0:r0 + hc + 2].reshape(N, (hc + 2) * wp1, ck)
        outs.append(_run_fused(xs_c, w_taps, scale_p, shift_p, hc, wp1))
    out_flat = outs[0] if len(outs) == 1 else jnp.concatenate(outs, axis=1)

    out = out_flat.reshape(N, Ho, wp1, c_pad)[:, :, :Wo, :]   # drop pad column
    if not pad_output_channels:
        out = out[..., :C_out]
    # TODO(synk): Dropout2d(0.5) (when enabled) is identity at inference.
    return out


def down_block_forward(x_nchw, params):
    """Matches DownBlock.forward on NCHW input; returns NCHW (bf16)."""
    x_nhwc = jnp.transpose(x_nchw, (0, 2, 3, 1))
    out = down_block_forward_nhwc(x_nhwc, params)
    return jnp.transpose(out, (0, 3, 1, 2))


# ---------------------------------------------------------------------------
# Deterministic parameter init (shapes from DownBlock.__init__)
# ---------------------------------------------------------------------------
def init_params(key, in_ch, out_ch):
    k_w, k_g, k_b, k_m, k_v = jax.random.split(key, 5)
    return {
        "conv_w": 0.1 * jax.random.normal(k_w, (out_ch, in_ch, 4, 4), jnp.float32),
        "bn_gamma": 1.0 + 0.05 * jax.random.normal(k_g, (out_ch,), jnp.float32),
        "bn_beta": 0.05 * jax.random.normal(k_b, (out_ch,), jnp.float32),
        "bn_mean": 0.05 * jax.random.normal(k_m, (out_ch,), jnp.float32),
        "bn_var": jnp.abs(1.0 + 0.05 * jax.random.normal(k_v, (out_ch,), jnp.float32)),
        "bn_eps": 1e-5,
    }


if __name__ == "__main__":
    key = jax.random.PRNGKey(0)
    k_x, k_p = jax.random.split(key)

    N, C_in, H, W = 2, 4, 16, 16
    C_out = 8

    x = jax.random.normal(k_x, (N, C_in, H, W), jnp.float32)
    params = init_params(k_p, C_in, C_out)

    fwd = jax.jit(functools.partial(down_block_forward, params=params))
    out = fwd(x)
    jax.block_until_ready(out)
    assert out.shape == (N, C_out, H // 2, W // 2), out.shape

    # Reference with the same numeric path: bf16 conv operands, f32 accumulate,
    # f32 eval-mode BatchNorm epilogue, LeakyReLU(0.2).
    ref = jax.lax.conv_general_dilated(
        x.astype(jnp.bfloat16), params["conv_w"].astype(jnp.bfloat16),
        window_strides=(2, 2), padding=((1, 1), (1, 1)),
        dimension_numbers=("NCHW", "OIHW", "NCHW"),
        preferred_element_type=jnp.float32)
    s = params["bn_gamma"] / jnp.sqrt(params["bn_var"] + params["bn_eps"])
    sh = params["bn_beta"] - params["bn_mean"] * s
    ref = ref * s[None, :, None, None] + sh[None, :, None, None]
    ref = jnp.where(ref > 0, ref, 0.2 * ref)

    err = float(jnp.max(jnp.abs(out.astype(jnp.float32) - ref)))
    assert err < 2e-2, err
    print("KERNEL_OK")
</pallas_src>

<mosaic_0001>
module attributes {stable_mosaic.version = 11 : i64} {
  func.func @_down_block_kernel(%arg0: i32, %arg1: memref<1x90x16xbf16, #tpu.memory_space<vmem>>, %arg2: memref<4x16x128xbf16, #tpu.memory_space<vmem>>, %arg3: memref<1x128xf32, #tpu.memory_space<vmem>>, %arg4: memref<1x128xf32, #tpu.memory_space<vmem>>, %arg5: memref<1x72x128xbf16, #tpu.memory_space<vmem>>) attributes {dimension_semantics = [#tpu.dimension_semantics<parallel>], iteration_bounds = array<i64: 2>, scalar_prefetch = 0 : i64, scratch_operands = 0 : i64, tpu.core_type = #tpu.core_type<tc>, window_params = [{transform_indices = @transform_0, window_bounds = array<i64: 1, 90, 16>}, {pipeline_mode = #tpu.pipeline_mode<synchronous>, transform_indices = @transform_1, window_bounds = array<i64: 4, 16, 128>}, {pipeline_mode = #tpu.pipeline_mode<synchronous>, transform_indices = @transform_2, window_bounds = array<i64: 1, 128>}, {pipeline_mode = #tpu.pipeline_mode<synchronous>, transform_indices = @transform_3, window_bounds = array<i64: 1, 128>}, {transform_indices = @transform_4, window_bounds = array<i64: 1, 72, 128>}]} {
    %c0 = arith.constant 0 : index
    %c0_0 = arith.constant 0 : index
    %c0_1 = arith.constant 0 : index
    %0 = vector.load %arg1[%c0, %c0_0, %c0_1] : memref<1x90x16xbf16, #tpu.memory_space<vmem>>, vector<1x72x16xbf16>
    %1 = vector.shape_cast %0 : vector<1x72x16xbf16> to vector<72x16xbf16>
    %c0_2 = arith.constant 0 : index
    %c0_3 = arith.constant 0 : index
    %c0_4 = arith.constant 0 : index
    %2 = vector.load %arg2[%c0_2, %c0_3, %c0_4] : memref<4x16x128xbf16, #tpu.memory_space<vmem>>, vector<1x16x128xbf16>
    %3 = vector.shape_cast %2 : vector<1x16x128xbf16> to vector<16x128xbf16>
    %cst = arith.constant dense<0.000000e+00> : vector<72x128xf32>
    %4 = tpu.matmul %1, %3, %cst {dimension_numbers = #tpu.dot_dimension_numbers<[1], [0], [0], [1], [0, 0, 1, 1], [], []>} : vector<72x16xbf16>, vector<16x128xbf16>, vector<72x128xf32> -> vector<72x128xf32>
    %c0_5 = arith.constant 0 : index
    %c1 = arith.constant 1 : index
    %c0_6 = arith.constant 0 : index
    %5 = vector.load %arg1[%c0_5, %c1, %c0_6] : memref<1x90x16xbf16, #tpu.memory_space<vmem>>, vector<1x72x16xbf16>
    %6 = vector.shape_cast %5 : vector<1x72x16xbf16> to vector<72x16xbf16>
    %c1_7 = arith.constant 1 : index
    %c0_8 = arith.constant 0 : index
    %c0_9 = arith.constant 0 : index
    %7 = vector.load %arg2[%c1_7, %c0_8, %c0_9] : memref<4x16x128xbf16, #tpu.memory_space<vmem>>, vector<1x16x128xbf16>
    %8 = vector.shape_cast %7 : vector<1x16x128xbf16> to vector<16x128xbf16>
    %cst_10 = arith.constant dense<0.000000e+00> : vector<72x128xf32>
    %9 = tpu.matmul %6, %8, %cst_10 {dimension_numbers = #tpu.dot_dimension_numbers<[1], [0], [0], [1], [0, 0, 1, 1], [], []>} : vector<72x16xbf16>, vector<16x128xbf16>, vector<72x128xf32> -> vector<72x128xf32>
    %10 = arith.addf %4, %9 : vector<72x128xf32>
    %c0_11 = arith.constant 0 : index
    %c9 = arith.constant 9 : index
    %c0_12 = arith.constant 0 : index
    %11 = vector.load %arg1[%c0_11, %c9, %c0_12] : memref<1x90x16xbf16, #tpu.memory_space<vmem>>, vector<1x72x16xbf16>
    %12 = vector.shape_cast %11 : vector<1x72x16xbf16> to vector<72x16xbf16>
    %c2 = arith.constant 2 : index
    %c0_13 = arith.constant 0 : index
    %c0_14 = arith.constant 0 : index
    %13 = vector.load %arg2[%c2, %c0_13, %c0_14] : memref<4x16x128xbf16, #tpu.memory_space<vmem>>, vector<1x16x128xbf16>
    %14 = vector.shape_cast %13 : vector<1x16x128xbf16> to vector<16x128xbf16>
    %cst_15 = arith.constant dense<0.000000e+00> : vector<72x128xf32>
    %15 = tpu.matmul %12, %14, %cst_15 {dimension_numbers = #tpu.dot_dimension_numbers<[1], [0], [0], [1], [0, 0, 1, 1], [], []>} : vector<72x16xbf16>, vector<16x128xbf16>, vector<72x128xf32> -> vector<72x128xf32>
    %16 = arith.addf %10, %15 : vector<72x128xf32>
    %c0_16 = arith.constant 0 : index
    %c10 = arith.constant 10 : index
    %c0_17 = arith.constant 0 : index
    %17 = vector.load %arg1[%c0_16, %c10, %c0_17] : memref<1x90x16xbf16, #tpu.memory_space<vmem>>, vector<1x72x16xbf16>
    %18 = vector.shape_cast %17 : vector<1x72x16xbf16> to vector<72x16xbf16>
    %c3 = arith.constant 3 : index
    %c0_18 = arith.constant 0 : index
    %c0_19 = arith.constant 0 : index
    %19 = vector.load %arg2[%c3, %c0_18, %c0_19] : memref<4x16x128xbf16, #tpu.memory_space<vmem>>, vector<1x16x128xbf16>
    %20 = vector.shape_cast %19 : vector<1x16x128xbf16> to vector<16x128xbf16>
    %cst_20 = arith.constant dense<0.000000e+00> : vector<72x128xf32>
    %21 = tpu.matmul %18, %20, %cst_20 {dimension_numbers = #tpu.dot_dimension_numbers<[1], [0], [0], [1], [0, 0, 1, 1], [], []>} : vector<72x16xbf16>, vector<16x128xbf16>, vector<72x128xf32> -> vector<72x128xf32>
    %22 = arith.addf %16, %21 : vector<72x128xf32>
    %c0_21 = arith.constant 0 : index
    %c0_22 = arith.constant 0 : index
    %23 = vector.load %arg3[%c0_21, %c0_22] : memref<1x128xf32, #tpu.memory_space<vmem>>, vector<1x128xf32>
    %24 = vector.broadcast %23 : vector<1x128xf32> to vector<72x128xf32>
    %25 = arith.mulf %22, %24 : vector<72x128xf32>
    %c0_23 = arith.constant 0 : index
    %c0_24 = arith.constant 0 : index
    %26 = vector.load %arg4[%c0_23, %c0_24] : memref<1x128xf32, #tpu.memory_space<vmem>>, vector<1x128xf32>
    %27 = vector.broadcast %26 : vector<1x128xf32> to vector<72x128xf32>
    %28 = arith.addf %25, %27 : vector<72x128xf32>
    %cst_25 = arith.constant 0.000000e+00 : f32
    %29 = vector.broadcast %cst_25 : f32 to vector<72x128xf32>
    %30 = arith.cmpf ogt, %28, %29 : vector<72x128xf32>
    %cst_26 = arith.constant 2.000000e-01 : f32
    %31 = vector.broadcast %cst_26 : f32 to vector<72x128xf32>
    %32 = arith.mulf %31, %28 : vector<72x128xf32>
    %33 = arith.select %30, %28, %32 : vector<72x128xi1>, vector<72x128xf32>
    %34 = arith.truncf %33 : vector<72x128xf32> to vector<72x128xbf16>
    %c0_27 = arith.constant 0 : index
    %c0_28 = arith.constant 0 : index
    %c0_29 = arith.constant 0 : index
    %35 = vector.load %arg5[%c0_27, %c0_28, %c0_29] : memref<1x72x128xbf16, #tpu.memory_space<vmem>>, vector<1x72x128xbf16>
    %36 = vector.shape_cast %35 : vector<1x72x128xbf16> to vector<72x128xbf16>
    %37 = vector.shape_cast %34 : vector<72x128xbf16> to vector<1x72x128xbf16>
    tpu.vector_store %arg5[%c0_27, %c0_28, %c0_29], %37 {strides = array<i32>} : memref<1x72x128xbf16, #tpu.memory_space<vmem>>, vector<1x72x128xbf16>,
    return
  }
  func.func @transform_0(%arg0: i32) -> (i32, i32, i32) {
    %c0_i32 = arith.constant 0 : i32
    %c0_i32_0 = arith.constant 0 : i32
    %c0_i32_1 = arith.constant 0 : i32
    return %arg0, %c0_i32, %c0_i32_0 : i32, i32, i32
  }
  func.func @transform_1(%arg0: i32) -> (i32, i32, i32) {
    %c0_i32 = arith.constant 0 : i32
    %c0_i32_0 = arith.constant 0 : i32
    %c0_i32_1 = arith.constant 0 : i32
    %c0_i32_2 = arith.constant 0 : i32
    return %c0_i32, %c0_i32_0, %c0_i32_1 : i32, i32, i32
  }
  func.func @transform_2(%arg0: i32) -> (i32, i32) {
    %c0_i32 = arith.constant 0 : i32
    %c0_i32_0 = arith.constant 0 : i32
    %c0_i32_1 = arith.constant 0 : i32
    return %c0_i32, %c0_i32_0 : i32, i32
  }
  func.func @transform_3(%arg0: i32) -> (i32, i32) {
    %c0_i32 = arith.constant 0 : i32
    %c0_i32_0 = arith.constant 0 : i32
    %c0_i32_1 = arith.constant 0 : i32
    return %c0_i32, %c0_i32_0 : i32, i32
  }
  func.func @transform_4(%arg0: i32) -> (i32, i32, i32) {
    %c0_i32 = arith.constant 0 : i32
    %c0_i32_0 = arith.constant 0 : i32
    %c0_i32_1 = arith.constant 0 : i32
    return %arg0, %c0_i32, %c0_i32_0 : i32, i32, i32
  }
}

</mosaic_0001>

<llo_original>
// kernel: down_block_forward.1
$region0: #{down_block_forward.1}
  #allocation0 [shape = 'u32[]', space=smem, size = 0x4, offset = 0x4, fixed_abs, tag = 'smem constant byte address 0x4 - core index']
  #allocation1 [shape = 'u32[72,128]{1,0:T(1,128)}', space=vmem, size = 0x9000, scoped, tag = 'internal scratch']
  %s0 = inlined_call_operand.vmem [shape: bf16[2,90,16], index: 0, kind: input, shape index: {}]
  %s1 = inlined_call_operand.vmem [shape: bf16[4,16,128], index: 1, kind: input, shape index: {}]
  %s2 = inlined_call_operand.vmem [shape: f32[1,128], index: 2, kind: input, shape index: {}]
  %s3 = inlined_call_operand.vmem [shape: f32[1,128], index: 3, kind: input, shape index: {}]
  %s4 = inlined_call_operand.vmem [shape: bf16[2,72,128], index: 4, kind: output, shape index: {}]
  %s5 = sld [smem:[#allocation0]]
  $region49: #{down_block_forward.1} parent=0
    _
  %s7 = ssub.s32 1, %s5
  %s8 = scalar_select 0, %s7, %s5
  loop: start=0, step=1, limit=4
  $region2: #{down_block_forward.1} parent=0 // loop_pre_header
    _
  $region3: #{down_block_forward.1} parent=0 // loop_header
    %s10 = sphi 0, %s14
    %p11 = scmp.ge.s32.totalorder %s10, 4
    %s20 = sphi 0, %s22
    %s23 = sphi 0, %s20
    %s24 = sphi 0, %s23
    %s40 = sphi 0, %s24
    %s44 = sphi 0, %s44
    %s46 = sphi 0, %s44
    %s47 = sphi 0, %s46
    %s61 = sphi 0, %s47
    %s65 = sphi 0, %s65
    %s67 = sphi 0, %s65
    %s68 = sphi 0, %s67
    %s82 = sphi 0, %s68
    %s86 = sphi 0, %s86
    %s88 = sphi 0, %s86
    %s89 = sphi 0, %s88
    %s103 = sphi 0, %s89
    %s109 = sphi 0, %s111
    %s112 = sphi 0, %s109
    %s113 = sphi 0, %s112
    %s129 = sphi 0, %s113
  $region4: #{down_block_forward.1} parent=0 // loop_header_branch
    %13 = sbr.rel (%p11) target = $region8
  $region5: #{down_block_forward.1} parent=0 // loop_body
    %s15 = ssub.s32 %s10, 1
    %s16 = ssub.s32 %s10, 2
    %s17 = sadd.s32 %s10, 1
    %s18 = ssub.s32 %s10, %s17
    %p19 = scmp.eq.s32.totalorder %s18, 0
    %s21 = sadd.s32 %s20, 1
    %s22 = scalar_select %p19, %s20, %s21
    %p25 = pneg %p19
    %p26 = scmp.eq.s32.totalorder %s10, 1
    %p27 = por %p25, %p26
    %p28 = scmp.ne.s32.totalorder %s20, %s23
    %p29 = scmp.eq.s32.totalorder %s10, 0
    %p30 = por %p28, %p29
    %p31 = scmp.ne.s32.totalorder %s20, %s23
    %p32 = scmp.eq.s32.totalorder %s15, 1
    %p33 = por %p31, %p32
    %p34 = scmp.ne.s32.totalorder %s23, %s24
    %p35 = scmp.eq.s32.totalorder %s15, 0
    %p36 = por %p34, %p35
    %p37 = scmp.ne.s32.totalorder %s23, %s24
    %p38 = scmp.eq.s32.totalorder %s16, 1
    %p39 = por %p37, %p38
    %p41 = scmp.ne.s32.totalorder %s24, %s40
    %p42 = scmp.eq.s32.totalorder %s16, 0
    %p43 = por %p41, %p42
    %s45 = sadd.s32 %s44, 1
    %p48 = scmp.eq.s32.totalorder %s10, 1
    %p49 = scmp.ne.s32.totalorder %s44, %s46
    %p50 = scmp.eq.s32.totalorder %s10, 0
    %p51 = por %p49, %p50
    %p52 = scmp.ne.s32.totalorder %s44, %s46
    %p53 = scmp.eq.s32.totalorder %s15, 1
    %p54 = por %p52, %p53
    %p55 = scmp.ne.s32.totalorder %s46, %s47
    %p56 = scmp.eq.s32.totalorder %s15, 0
    %p57 = por %p55, %p56
    %p58 = scmp.ne.s32.totalorder %s46, %s47
    %p59 = scmp.eq.s32.totalorder %s16, 1
    %p60 = por %p58, %p59
    %p62 = scmp.ne.s32.totalorder %s47, %s61
    %p63 = scmp.eq.s32.totalorder %s16, 0
    %p64 = por %p62, %p63
    %s66 = sadd.s32 %s65, 1
    %p69 = scmp.eq.s32.totalorder %s10, 1
    %p70 = scmp.ne.s32.totalorder %s65, %s67
    %p71 = scmp.eq.s32.totalorder %s10, 0
    %p72 = por %p70, %p71
    %p73 = scmp.ne.s32.totalorder %s65, %s67
    %p74 = scmp.eq.s32.totalorder %s15, 1
    %p75 = por %p73, %p74
    %p76 = scmp.ne.s32.totalorder %s67, %s68
    %p77 = scmp.eq.s32.totalorder %s15, 0
    %p78 = por %p76, %p77
    %p79 = scmp.ne.s32.totalorder %s67, %s68
    %p80 = scmp.eq.s32.totalorder %s16, 1
    %p81 = por %p79, %p80
    %p83 = scmp.ne.s32.totalorder %s68, %s82
    %p84 = scmp.eq.s32.totalorder %s16, 0
    %p85 = por %p83, %p84
    %s87 = sadd.s32 %s86, 1
    %p90 = scmp.eq.s32.totalorder %s10, 1
    %p91 = scmp.ne.s32.totalorder %s86, %s88
    %p92 = scmp.eq.s32.totalorder %s10, 0
    %p93 = por %p91, %p92
    %p94 = scmp.ne.s32.totalorder %s86, %s88
    %p95 = scmp.eq.s32.totalorder %s15, 1
    %p96 = por %p94, %p95
    %p97 = scmp.ne.s32.totalorder %s88, %s89
    %p98 = scmp.eq.s32.totalorder %s15, 0
    %p99 = por %p97, %p98
    %p100 = scmp.ne.s32.totalorder %s88, %s89
    %p101 = scmp.eq.s32.totalorder %s16, 1
    %p102 = por %p100, %p101
    %p104 = scmp.ne.s32.totalorder %s89, %s103
    %p105 = scmp.eq.s32.totalorder %s16, 0
    %p106 = por %p104, %p105
    %s107 = ssub.s32 %s10, %s17
    %p108 = scmp.eq.s32.totalorder %s107, 0
    %s110 = sadd.s32 %s109, 1
    %s111 = scalar_select %p108, %s109, %s110
    %p114 = pneg %p108
    %p115 = scmp.eq.s32.totalorder %s10, 1
    %p116 = por %p114, %p115
    %p117 = scmp.ne.s32.totalorder %s109, %s112
    %p118 = scmp.eq.s32.totalorder %s10, 0
    %p119 = por %p117, %p118
    %p120 = scmp.ne.s32.totalorder %s109, %s112
    %p121 = scmp.eq.s32.totalorder %s15, 1
    %p122 = por %p120, %p121
    %p123 = scmp.ne.s32.totalorder %s112, %s113
    %p124 = scmp.eq.s32.totalorder %s15, 0
    %p125 = por %p123, %p124
    %p126 = scmp.ne.s32.totalorder %s112, %s113
    %p127 = scmp.eq.s32.totalorder %s16, 1
    %p128 = por %p126, %p127
    %p130 = scmp.ne.s32.totalorder %s113, %s129
    %p131 = scmp.eq.s32.totalorder %s16, 0
    %p132 = por %p130, %p131
    %p133 = scmp.le.s32.totalorder 1, %s10
    %p134 = scmp.lt.s32.totalorder %s10, 3
    %p135 = pnand %p133, %p134
    %p136 = pneg %p135
    // Predicated region
    $region9: #{down_block_forward.1} parent=5 // pred_check
      _
    $region10: #{down_block_forward.1} parent=5 // pred_check_branch
      %138 = sbr.rel (%p135) target = $region12
    $region11: #{down_block_forward.1} parent=5 // pred_region
      %s139 = ssub.s32 %s10, 1
      // Predicated region
      $region13: #{down_block_forward.1} parent=11 // pred_check
        %p140 = pneg %p57
      $region14: #{down_block_forward.1} parent=11 // pred_check_branch
        %142 = sbr.rel (%p140) target = $region16
      $region15: #{down_block_forward.1} parent=11 // pred_region
        _
      $region16: #{down_block_forward.1} parent=11 // pred_fallthru
        _
      // Predicated region
      $region17: #{down_block_forward.1} parent=11 // pred_check
        %p143 = pneg %p78
      $region18: #{down_block_forward.1} parent=11 // pred_check_branch
        %145 = sbr.rel (%p143) target = $region20
      $region19: #{down_block_forward.1} parent=11 // pred_region
        _
      $region20: #{down_block_forward.1} parent=11 // pred_fallthru
        _
      // Predicated region
      $region21: #{down_block_forward.1} parent=11 // pred_check
        %p146 = pneg %p99
      $region22: #{down_block_forward.1} parent=11 // pred_check_branch
        %148 = sbr.rel (%p146) target = $region24
      $region23: #{down_block_forward.1} parent=11 // pred_region
        _
      $region24: #{down_block_forward.1} parent=11 // pred_fallthru
        _
    $region12: #{down_block_forward.1} parent=5 // pred_fallthru
      _
    %p149 = scmp.lt.s32.totalorder %s10, 2
    // Predicated region
    $region25: #{down_block_forward.1} parent=5 // pred_check
      %p150 = pneg %p149
    $region26: #{down_block_forward.1} parent=5 // pred_check_branch
      %152 = sbr.rel (%p150) target = $region28
    $region27: #{down_block_forward.1} parent=5 // pred_region
      // Predicated region
      $region29: #{down_block_forward.1} parent=27 // pred_check
        %p153 = pneg %p30
      $region30: #{down_block_forward.1} parent=27 // pred_check_branch
        %155 = sbr.rel (%p153) target = $region32
      $region31: #{down_block_forward.1} parent=27 // pred_region
        %p156 = scmp.lt.s32.totalorder %s10, 1
        %s157 = scalar_select %p156, %s10, 1
        %s158 = smul.addr %s157, 12
        %s159 = smul.addr %s158, 4
        %s160 = scalar_lea.vmem %s0, %s159
      $region32: #{down_block_forward.1} parent=27 // pred_fallthru
        _
    $region28: #{down_block_forward.1} parent=5 // pred_fallthru
      _
    %p161 = scmp.le.s32.totalorder 1, %s10
    %p162 = scmp.lt.s32.totalorder %s10, 3
    %p163 = pnand %p161, %p162
    %p164 = pneg %p163
    // Predicated region
    $region33: #{down_block_forward.1} parent=5 // pred_check
      _
    $region34: #{down_block_forward.1} parent=5 // pred_check_branch
      %166 = sbr.rel (%p163) target = $region36
    $region35: #{down_block_forward.1} parent=5 // pred_region
      %s167 = ssub.s32 %s10, 1
      %p168 = scmp.lt.s32.totalorder %s15, 1
      %s169 = scalar_select %p168, %s15, 1
      %s170 = smul.addr %s169, 12
      %s171 = smul.addr %s170, 4
      %s172 = scalar_lea.vmem %s0, %s171
      %p173 = pneg %p36
      %p174 = pneg %p33
      %p175 = pneg %p57
      %p176 = pneg %p54
      %p177 = pneg %p78
      %p178 = pneg %p75
      %p179 = pneg %p99
      %p180 = pneg %p96
      %p181 = pneg %p125
      %p182 = pneg %p122
      %p183 = scmp.lt.s32.totalorder %s15, 1
      %s184 = scalar_select %p183, %s15, 1
      %s185 = smul.addr %s184, 9
      %s186 = smul.addr %s185, 4
      %s187 = scalar_lea.vmem %s4, %s186
      %p188 = scmp.lt.s32.totalorder %s15, 1
      %s189 = scalar_select %p188, %s15, 1
      %s190 = smul.addr %s189, 12
      %s191 = smul.addr %s190, 4
      %s192 = scalar_lea.vmem %s0, %s191
      %p193 = scmp.lt.s32.totalorder %s15, 1
      %s194 = scalar_select %p193, %s15, 1
      %s195 = smul.addr %s194, 9
      %s196 = smul.addr %s195, 4
      %s197 = scalar_lea.vmem %s4, %s196
      %v199 = vld [vmem:[%s192] sm:$0xf]
      %v200 = vld [vmem:[%s192 + $0x4] sm:$0xf]
      %v201 = vld [vmem:[%s192 + $0x8] sm:$0xf]
      %v202 = vld [vmem:[%s192 + $0xc] sm:$0xf]
      %v203 = vld [vmem:[%s192 + $0x10] sm:$0xf]
      %v204 = vld [vmem:[%s192 + $0x14] sm:$0xf]
      %v205 = vld [vmem:[%s192 + $0x18] sm:$0xf]
      %v206 = vld [vmem:[%s192 + $0x1c] sm:$0xf]
      %v207 = vld [vmem:[%s192 + $0x20] sm:$0xf]
      %v208 = vld [vmem:[%s1] sm:$0xf]
      %v209 = vld [vmem:[%s1 + $0x4] sm:$0xf]
      %v210 = vld [vmem:[%s192 + $0x24] sm:$0x1]
      %s211 = scalar_lea.vmem %s1, 8
      %v212 = vld [vmem:[%s211] sm:$0xf]
      %v213 = vld [vmem:[%s211 + $0x4] sm:$0xf]
      %v224 = vunpack.c.l.b16 %v199
      %v225 = vunpack.c.l.b16 %v200
      %v226 = vunpack.c.l.b16 %v201
      %v227 = vunpack.c.l.b16 %v202
      %v228 = vunpack.c.l.b16 %v203
      %v229 = vunpack.c.l.b16 %v204
      %v230 = vunpack.c.l.b16 %v205
      %v231 = vunpack.c.l.b16 %v206
      %v232 = vunpack.c.l.b16 %v207
      %v233 = vunpack.c.l.b16 %v210
      %v234 = vpack.c.b16 %v225, %v224
      %v235 = vpack.c.b16 %v227, %v226
      %v236 = vpack.c.b16 %v229, %v228
      %v237 = vpack.c.b16 %v231, %v230
      %v238 = vpack.c.b16 %v233, %v232
      %vm239 = vsmask.f32 7424
      %v241 = vshrl.u32 %v234, 16
      %v243 = vshll.u32 %v234, 16
      %v245 = vrot.slane %v243, 1
      %v246 = vor.u32 %v241, %v245
      %v248 = vshll.u32 %v235, 16
      %v250 = vrot.slane %v248, 1
      %v251 = vsel %vm239, %v246, %v250
      %v252 = vshrl.u32 %v235, 16
      %v254 = vor.u32 %v252, %v250
      %v256 = vshll.u32 %v236, 16
      %v258 = vrot.slane %v256, 1
      %v259 = vsel %vm239, %v254, %v258
      %v260 = vshrl.u32 %v236, 16
      %v262 = vor.u32 %v260, %v258
      %v264 = vshll.u32 %v237, 16
      %v266 = vrot.slane %v264, 1
      %v267 = vsel %vm239, %v262, %v266
      %v268 = vshrl.u32 %v237, 16
      %v270 = vor.u32 %v268, %v266
      %v272 = vshll.u32 %v238, 16
      %v274 = vrot.slane %v272, 1
      %v275 = vsel %vm239, %v270, %v274
      %v276 = vshrl.u32 %v238, 16
      %v278 = vor.u32 %v276, %v274
      %v281 = vunpack.c.l.b16 %v212
      %v282 = vunpack.c.l.b16 %v213
      %v283 = vpack.c.b16 %v282, %v281
      %vm285 = vcmask 130048
      %v287 = vsel %vm285, %v251, 0
      %v290 = vsel %vm285, %v259, 0
      %v293 = vsel %vm285, %v267, 0
      %v296 = vsel %vm285, %v275, 0
      %v299 = vsel %vm285, %v278, 0
      %301 = vmatpush.bf16.msra.mxu0 0
      %302 = vmatpush.bf16.msra.mxu0 0
      %303 = vmatpush.bf16.msra.mxu0 0
      %304 = vmatpush.bf16.msra.mxu0 0
      %305 = vmatpush.bf16.msra.mxu0 0
      %306 = vmatpush.bf16.msra.mxu0 0
      %307 = vmatpush.bf16.msra.mxu0 0
      %308 = vmatpush.bf16.msra.mxu0 %v283
      %309 = vmatmul.bf16.gmra.mxu0 %v287
      %v310 = vpop.f32.mrf.mxu0
      %v311 = vadd.f32 0.0, %v310
      %v312 = vpop.f32.mrf.mxu0
      %v313 = vadd.f32 0.0, %v312
      %314 = vmatmul.bf16.gmra.mxu0 %v290
      %v315 = vpop.f32.mrf.mxu0
      %v316 = vadd.f32 0.0, %v315
      %v317 = vpop.f32.mrf.mxu0
      %v318 = vadd.f32 0.0, %v317
      %319 = vmatmul.bf16.gmra.mxu0 %v293
      %v320 = vpop.f32.mrf.mxu0
      %v321 = vadd.f32 0.0, %v320
      %v322 = vpop.f32.mrf.mxu0
      %v323 = vadd.f32 0.0, %v322
      %324 = vmatmul.bf16.gmra.mxu0 %v296
      %v325 = vpop.f32.mrf.mxu0
      %v326 = vadd.f32 0.0, %v325
      %v327 = vpop.f32.mrf.mxu0
      %v328 = vadd.f32 0.0, %v327
      %329 = vmatmul.bf16.gmra.mxu0 %v299
      %v330 = vpop.f32.mrf.mxu0
      %v331 = vadd.f32 0.0, %v330
      %v332 = vpop.f32.mrf.mxu0
      %333 = vdwg.mxu0
      %v334 = vpack.c.b16 %v232, %v232
      %v337 = vunpack.c.l.b16 %v208
      %v338 = vunpack.c.l.b16 %v209
      %v339 = vpack.c.b16 %v338, %v337
      %v341 = vsel %vm285, %v234, 0
      %v343 = vsel %vm285, %v235, 0
      %v345 = vsel %vm285, %v236, 0
      %v347 = vsel %vm285, %v237, 0
      %v350 = vsel %vm285, %v334, 0
      %352 = vmatpush.bf16.msra.mxu0 0
      %353 = vmatpush.bf16.msra.mxu0 0
      %354 = vmatpush.bf16.msra.mxu0 0
      %355 = vmatpush.bf16.msra.mxu0 0
      %356 = vmatpush.bf16.msra.mxu0 0
      %357 = vmatpush.bf16.msra.mxu0 0
      %358 = vmatpush.bf16.msra.mxu0 0
      %359 = vmatpush.bf16.msra.mxu0 %v339
      %360 = vmatmul.bf16.gmra.mxu0 %v341
      %v361 = vpop.f32.mrf.mxu0
      %v362 = vadd.f32 %v311, %v361
      %v363 = vpop.f32.mrf.mxu0
      %v364 = vadd.f32 %v313, %v363
      %365 = vmatmul.bf16.gmra.mxu0 %v343
      %v366 = vpop.f32.mrf.mxu0
      %v367 = vadd.f32 %v316, %v366
      %v368 = vpop.f32.mrf.mxu0
      %v369 = vadd.f32 %v318, %v368
      %370 = vmatmul.bf16.gmra.mxu0 %v345
      %v371 = vpop.f32.mrf.mxu0
      %v372 = vadd.f32 %v321, %v371
      %v373 = vpop.f32.mrf.mxu0
      %v374 = vadd.f32 %v323, %v373
      %375 = vmatmul.bf16.gmra.mxu0 %v347
      %v376 = vpop.f32.mrf.mxu0
      %v377 = vadd.f32 %v326, %v376
      %v378 = vpop.f32.mrf.mxu0
      %v379 = vadd.f32 %v328, %v378
      %380 = vmatmul.bf16.gmra.mxu0 %v350
      %v381 = vpop.f32.mrf.mxu0
      %v382 = vadd.f32 %v331, %v381
      %v383 = vpop.f32.mrf.mxu0
      %384 = vdwg.mxu0
      %v385 = vld [vmem:[%s192 + $0x4] sm:$0xf]
      %v386 = vld [vmem:[%s192 + $0x8] sm:$0xf]
      %v387 = vld [vmem:[%s192 + $0xc] sm:$0xf]
      %v388 = vld [vmem:[%s192 + $0x10] sm:$0xf]
      %v389 = vld [vmem:[%s192 + $0x14] sm:$0xf]
      %v390 = vld [vmem:[%s192 + $0x18] sm:$0xf]
      %v391 = vld [vmem:[%s192 + $0x1c] sm:$0xf]
      %v392 = vld [vmem:[%s192 + $0x20] sm:$0xf]
      %v393 = vld [vmem:[%s192 + $0x24] sm:$0xf]
      %v394 = vld [vmem:[%s192 + $0x28] sm:$0x1]
      %s395 = scalar_lea.vmem %s1, 16
      %v396 = vld [vmem:[%s395] sm:$0xf]
      %v397 = vld [vmem:[%s395 + $0x4] sm:$0xf]
      %v408 = vunpack.c.l.b16 %v385
      %v409 = vunpack.c.l.b16 %v386
      %v410 = vunpack.c.l.b16 %v387
      %v411 = vunpack.c.l.b16 %v388
      %v412 = vunpack.c.l.b16 %v389
      %v413 = vunpack.c.l.b16 %v390
      %v414 = vunpack.c.l.b16 %v391
      %v415 = vunpack.c.l.b16 %v392
      %v416 = vunpack.c.l.b16 %v393
      %v417 = vunpack.c.l.b16 %v394
      %v418 = vpack.c.b16 %v409, %v408
      %v419 = vpack.c.b16 %v411, %v410
      %v420 = vpack.c.b16 %v413, %v412
      %v421 = vpack.c.b16 %v415, %v414
      %v422 = vpack.c.b16 %v417, %v416
      %v424 = vshrl.u32 %v418, 16
      %v426 = vshll.u32 %v418, 16
      %v428 = vrot.slane %v426, 1
      %v429 = vor.u32 %v424, %v428
      %v431 = vshll.u32 %v419, 16
      %v433 = vrot.slane %v431, 1
      %v434 = vsel %vm239, %v429, %v433
      %v435 = vshrl.u32 %v419, 16
      %v437 = vor.u32 %v435, %v433
      %v439 = vshll.u32 %v420, 16
      %v441 = vrot.slane %v439, 1
      %v442 = vsel %vm239, %v437, %v441
      %v443 = vshrl.u32 %v420, 16
      %v445 = vor.u32 %v443, %v441
      %v447 = vshll.u32 %v421, 16
      %v449 = vrot.slane %v447, 1
      %v450 = vsel %vm239, %v445, %v449
      %v451 = vshrl.u32 %v421, 16
      %v453 = vor.u32 %v451, %v449
      %v455 = vshll.u32 %v422, 16
      %v457 = vrot.slane %v455, 1
      %v458 = vsel %vm239, %v453, %v457
      %v459 = vshrl.u32 %v422, 16
      %v461 = vor.u32 %v459, %v457
      %v464 = vunpack.c.l.b16 %v396
      %v465 = vunpack.c.l.b16 %v397
      %v466 = vpack.c.b16 %v465, %v464
      %v469 = vsel %vm285, %v434, 0
      %v472 = vsel %vm285, %v442, 0
      %v475 = vsel %vm285, %v450, 0
      %v478 = vsel %vm285, %v458, 0
      %v481 = vsel %vm285, %v461, 0
      %483 = vmatpush.bf16.msra.mxu0 0
      %484 = vmatpush.bf16.msra.mxu0 0
      %485 = vmatpush.bf16.msra.mxu0 0
      %486 = vmatpush.bf16.msra.mxu0 0
      %487 = vmatpush.bf16.msra.mxu0 0
      %488 = vmatpush.bf16.msra.mxu0 0
      %489 = vmatpush.bf16.msra.mxu0 0
      %490 = vmatpush.bf16.msra.mxu0 %v466
      %491 = vmatmul.bf16.gmra.mxu0 %v469
      %v492 = vpop.f32.mrf.mxu0
      %v493 = vadd.f32 0.0, %v492
      %v494 = vpop.f32.mrf.mxu0
      %v495 = vadd.f32 0.0, %v494
      %496 = vmatmul.bf16.gmra.mxu0 %v472
      %v497 = vpop.f32.mrf.mxu0
      %v498 = vadd.f32 0.0, %v497
      %v499 = vpop.f32.mrf.mxu0
      %v500 = vadd.f32 0.0, %v499
      %501 = vmatmul.bf16.gmra.mxu0 %v475
      %v502 = vpop.f32.mrf.mxu0
      %v503 = vadd.f32 0.0, %v502
      %v504 = vpop.f32.mrf.mxu0
      %v505 = vadd.f32 0.0, %v504
      %506 = vmatmul.bf16.gmra.mxu0 %v478
      %v507 = vpop.f32.mrf.mxu0
      %v508 = vadd.f32 0.0, %v507
      %v509 = vpop.f32.mrf.mxu0
      %v510 = vadd.f32 0.0, %v509
      %511 = vmatmul.bf16.gmra.mxu0 %v481
      %v512 = vpop.f32.mrf.mxu0
      %v513 = vadd.f32 0.0, %v512
      %v514 = vpop.f32.mrf.mxu0
      %515 = vdwg.mxu0
      %v516 = vadd.f32 %v362, %v493
      %v517 = vadd.f32 %v364, %v495
      %v518 = vadd.f32 %v367, %v498
      %v519 = vadd.f32 %v369, %v500
      %v520 = vadd.f32 %v372, %v503
      %v521 = vadd.f32 %v374, %v505
      %v522 = vadd.f32 %v377, %v508
      %v523 = vadd.f32 %v379, %v510
      %v524 = vadd.f32 %v382, %v513
      %v525 = vld [vmem:[%s192 + $0x4] sm:$0xe]
      %s526 = scalar_lea.vmem %s1, 24
      %v527 = vld [vmem:[%s526] sm:$0xf]
      %v528 = vld [vmem:[%s526 + $0x4] sm:$0xf]
      %v530 = vunpack.c.l.b16 %v525
      %v531 = vpack.c.b16 %v409, %v530
      %vm532 = vcmask 1046528
      %v533 = vrot.slane %v531, 1
      %v534 = vrot.slane %v419, 1
      %v535 = vsel %vm532, %v533, %v534
      %v536 = vrot.slane %v420, 1
      %v537 = vsel %vm532, %v534, %v536
      %v538 = vrot.slane %v421, 1
      %v539 = vsel %vm532, %v536, %v538
      %v540 = vrot.slane %v422, 1
      %v541 = vsel %vm532, %v538, %v540
      %v544 = vunpack.c.l.b16 %v527
      %v545 = vunpack.c.l.b16 %v528
      %v546 = vpack.c.b16 %v545, %v544
      %v549 = vsel %vm285, %v535, 0
      %v552 = vsel %vm285, %v537, 0
      %v555 = vsel %vm285, %v539, 0
      %v558 = vsel %vm285, %v541, 0
      %v561 = vsel %vm285, %v540, 0
      %563 = vmatpush.bf16.msra.mxu0 0
      %564 = vmatpush.bf16.msra.mxu0 0
      %565 = vmatpush.bf16.msra.mxu0 0
      %566 = vmatpush.bf16.msra.mxu0 0
      %567 = vmatpush.bf16.msra.mxu0 0
      %568 = vmatpush.bf16.msra.mxu0 0
      %569 = vmatpush.bf16.msra.mxu0 0
      %570 = vmatpush.bf16.msra.mxu0 %v546
      %571 = vmatmul.bf16.gmra.mxu0 %v549
      %v572 = vpop.f32.mrf.mxu0
      %v573 = vadd.f32 0.0, %v572
      %v574 = vpop.f32.mrf.mxu0
      %v575 = vadd.f32 0.0, %v574
      %576 = vmatmul.bf16.gmra.mxu0 %v552
      %v577 = vpop.f32.mrf.mxu0
      %v578 = vadd.f32 0.0, %v577
      %v579 = vpop.f32.mrf.mxu0
      %v580 = vadd.f32 0.0, %v579
      %581 = vmatmul.bf16.gmra.mxu0 %v555
      %v582 = vpop.f32.mrf.mxu0
      %v583 = vadd.f32 0.0, %v582
      %v584 = vpop.f32.mrf.mxu0
      %v585 = vadd.f32 0.0, %v584
      %586 = vmatmul.bf16.gmra.mxu0 %v558
      %v587 = vpop.f32.mrf.mxu0
      %v588 = vadd.f32 0.0, %v587
      %v589 = vpop.f32.mrf.mxu0
      %v590 = vadd.f32 0.0, %v589
      %591 = vmatmul.bf16.gmra.mxu0 %v561
      %v592 = vpop.f32.mrf.mxu0
      %v593 = vadd.f32 0.0, %v592
      %v594 = vpop.f32.mrf.mxu0
      %595 = vdwg.mxu0
      %v596 = vadd.f32 %v516, %v573
      %v597 = vadd.f32 %v517, %v575
      %v598 = vadd.f32 %v518, %v578
      %v599 = vadd.f32 %v519, %v580
      %v600 = vadd.f32 %v520, %v583
      %v601 = vadd.f32 %v521, %v585
      %v602 = vadd.f32 %v522, %v588
      %v603 = vadd.f32 %v523, %v590
      %v604 = vadd.f32 %v524, %v593
      %v605 = vld [vmem:[%s2] sm:$0x1]
      %v607 = vperm.slane %v605, 0
      %v609 = vmul.f32 %v596, %v607
      %v610 = vmul.f32 %v597, %v607
      %v611 = vmul.f32 %v598, %v607
      %v612 = vmul.f32 %v599, %v607
      %v613 = vmul.f32 %v600, %v607
      %v614 = vmul.f32 %v601, %v607
      %v615 = vmul.f32 %v602, %v607
      %v616 = vmul.f32 %v603, %v607
      %v617 = vmul.f32 %v604, %v607
      %v618 = vld [vmem:[%s3] sm:$0x1]
      %v620 = vperm.slane %v618, 0
      %v622 = vadd.f32 %v609, %v620
      %v623 = vadd.f32 %v610, %v620
      %v624 = vadd.f32 %v611, %v620
      %v625 = vadd.f32 %v612, %v620
      %v626 = vadd.f32 %v613, %v620
      %v627 = vadd.f32 %v614, %v620
      %v628 = vadd.f32 %v615, %v620
      %v629 = vadd.f32 %v616, %v620
      %v630 = vadd.f32 %v617, %v620
      %vm631 = vcmp.gt.f32.partialorder %v622, 0.0
      %vm632 = vcmp.gt.f32.partialorder %v623, 0.0
      %vm633 = vcmp.gt.f32.partialorder %v624, 0.0
      %vm634 = vcmp.gt.f32.partialorder %v625, 0.0
      %vm635 = vcmp.gt.f32.partialorder %v626, 0.0
      %vm636 = vcmp.gt.f32.partialorder %v627, 0.0
      %vm637 = vcmp.gt.f32.partialorder %v628, 0.0
      %vm638 = vcmp.gt.f32.partialorder %v629, 0.0
      %vm639 = vcmp.gt.f32.partialorder %v630, 0.0
      %v640 = vmul.f32 %v622, 0.2
      %v641 = vmul.f32 %v623, 0.2
      %v642 = vmul.f32 %v624, 0.2
      %v643 = vmul.f32 %v625, 0.2
      %v644 = vmul.f32 %v626, 0.2
      %v645 = vmul.f32 %v627, 0.2
      %v646 = vmul.f32 %v628, 0.2
      %v647 = vmul.f32 %v629, 0.2
      %v648 = vmul.f32 %v630, 0.2
      %v649 = vsel %vm631, %v622, %v640
      %v650 = vsel %vm632, %v623, %v641
      %v651 = vsel %vm633, %v624, %v642
      %v652 = vsel %vm634, %v625, %v643
      %v653 = vsel %vm635, %v626, %v644
      %v654 = vsel %vm636, %v627, %v645
      %v655 = vsel %vm637, %v628, %v646
      %v656 = vsel %vm638, %v629, %v647
      %v657 = vsel %vm639, %v630, %v648
      %v658 = vpack.c.bf16 %v649, %v649
      %v659 = vpack.c.bf16 %v650, %v650
      %v660 = vpack.c.bf16 %v651, %v651
      %v661 = vpack.c.bf16 %v652, %v652
      %v662 = vpack.c.bf16 %v653, %v653
      %v663 = vpack.c.bf16 %v654, %v654
      %v664 = vpack.c.bf16 %v655, %v655
      %v665 = vpack.c.bf16 %v656, %v656
      %v666 = vpack.c.bf16 %v657, %v657
      %667 = vst [vmem:[%s197] sm:$0xf] %v658
      %668 = vst [vmem:[%s197 + $0x4] sm:$0xf] %v659
      %669 = vst [vmem:[%s197 + $0x8] sm:$0xf] %v660
      %670 = vst [vmem:[%s197 + $0xc] sm:$0xf] %v661
      %671 = vst [vmem:[%s197 + $0x10] sm:$0xf] %v662
      %672 = vst [vmem:[%s197 + $0x14] sm:$0xf] %v663
      %673 = vst [vmem:[%s197 + $0x18] sm:$0xf] %v664
      %674 = vst [vmem:[%s197 + $0x1c] sm:$0xf] %v665
      %675 = vst [vmem:[%s197 + $0x20] sm:$0xf] %v666
      %p676 = scmp.lt.s32.totalorder %s15, 1
      %s677 = scalar_select %p676, %s15, 1
      %s678 = smul.addr %s677, 9
      %s679 = smul.addr %s678, 4
      %s680 = scalar_lea.vmem %s4, %s679
      // Predicated region
      $region37: #{down_block_forward.1} parent=35 // pred_check
        %p681 = pneg %p122
      $region38: #{down_block_forward.1} parent=35 // pred_check_branch
        %683 = sbr.rel (%p681) target = $region40
      $region39: #{down_block_forward.1} parent=35 // pred_region
        _
      $region40: #{down_block_forward.1} parent=35 // pred_fallthru
        _
    $region36: #{down_block_forward.1} parent=5 // pred_fallthru
      _
    %p684 = scmp.le.s32.totalorder 2, %s10
    // Predicated region
    $region41: #{down_block_forward.1} parent=5 // pred_check
      %p685 = pneg %p684
    $region42: #{down_block_forward.1} parent=5 // pred_check_branch
      %687 = sbr.rel (%p685) target = $region44
    $region43: #{down_block_forward.1} parent=5 // pred_region
      %s688 = ssub.s32 %s10, 2
      // Predicated region
      $region45: #{down_block_forward.1} parent=43 // pred_check
        %p689 = pneg %p128
      $region46: #{down_block_forward.1} parent=43 // pred_check_branch
        %691 = sbr.rel (%p689) target = $region48
      $region47: #{down_block_forward.1} parent=43 // pred_region
        %p692 = scmp.lt.s32.totalorder %s16, 1
        %s693 = scalar_select %p692, %s16, 1
        %s694 = smul.addr %s693, 9
        %s695 = smul.addr %s694, 4
        %s696 = scalar_lea.vmem %s4, %s695
      $region48: #{down_block_forward.1} parent=43 // pred_fallthru
        _
    $region44: #{down_block_forward.1} parent=5 // pred_fallthru
      _
  $region6: #{down_block_forward.1} parent=0 // loop_footer
    %s14 = sadd.s32 1, %s10
  $region7: #{down_block_forward.1} parent=0 // loop_footer_branch
    %9 = sbr.rel target = $region3
  $region8: #{down_block_forward.1} parent=0 // loop_exit
    _

</llo_original>
